<compile_context>
chip_gen: v7x
topology: tpu7x:2x2x1
jax: 0.10.0
libtpu: 0.0.40
codegen_flags: <defaults>
</compile_context>

<pallas_src>
import jax
import jax.numpy as jnp
from jax.experimental import pallas as pl
from jax.experimental.pallas import tpu as pltpu

_IGNORE_INDEX = -100  # PyTorch F.nll_loss default


# ---------------------------------------------------------------------------
# Shared in-kernel tails
# ---------------------------------------------------------------------------

def _masked_mean_nll(logp, tgt):
    """NLL epilogue.

    logp : (B, C) f32 log-probabilities
    tgt  : (B, 1) i32 class indices (may contain -100 = ignore)
    Returns scalar mean NLL over the non-ignored rows (PyTorch semantics).
    Single sublane-reduction pass: per-row picked log-prob and validity mask are
    packed into one (B, 2) tile and reduced together.
    """
    B, C = logp.shape
    class_ids = jax.lax.broadcasted_iota(jnp.int32, (B, C), 1)      # (B, C)
    onehot = class_ids == tgt                                       # (B,1) -> (B,C) broadcast
    picked = jnp.where(onehot, logp, jnp.zeros_like(logp))          # ignored rows pick nothing
    row_nll = jnp.sum(picked, axis=-1, keepdims=True)               # (B, 1) lane reduce
    valid = (tgt != _IGNORE_INDEX).astype(jnp.float32)              # (B, 1)

    per_row = jnp.concatenate([row_nll, valid], axis=-1)            # (B, 2)
    sums = jnp.sum(per_row, axis=0, keepdims=True)                  # (1, 2) one sublane reduce
    total = jnp.sum(sums[:, 0:1])                                   # scalar extracts
    count = jnp.sum(sums[:, 1:2])
    # Keep the true divide: count is dynamic under ignore_index (== B when none ignored).
    return -total / count


def _log_softmax_f32(logits):
    """Numerically stable log_softmax along the last (lane) axis, f32 in / f32 out."""
    m = jnp.max(logits, axis=-1, keepdims=True)
    z = logits - m
    lse = jnp.log(jnp.sum(jnp.exp(z), axis=-1, keepdims=True))      # EUP exp/log
    return z - lse


# ---------------------------------------------------------------------------
# Kernels
# ---------------------------------------------------------------------------

def _nll_loss_kernel(pred_ref, target_ref, out_ref):
    """pred_ref: (B,C) VMEM native dtype; target_ref: (B,1) i32 VMEM; out_ref: (1,) f32 SMEM."""
    logp = pred_ref[...].astype(jnp.float32)     # in-kernel upcast (narrow bf16 DMA)
    out_ref[0] = _masked_mean_nll(logp, target_ref[...])


def _logsoftmax_nll_kernel(logits_ref, target_ref, out_ref):
    """Fused log_softmax + NLL: single VMEM residency of the [B, C] matrix."""
    x = logits_ref[...].astype(jnp.float32)
    out_ref[0] = _masked_mean_nll(_log_softmax_f32(x), target_ref[...])


def _fc_logsoftmax_nll_kernel(feat_ref, w_ref, b_ref, target_ref, out_ref):
    """Fully fused classifier tail: FC matmul (MXU) + log_softmax + NLL.

    feat_ref : (B, H) VMEM, native dtype (fed to the MXU as-is)
    w_ref    : (H, C) VMEM, native dtype  (torch Linear weight transposed)
    b_ref    : (1, C) VMEM
    """
    logits = jnp.dot(feat_ref[...], w_ref[...],
                     preferred_element_type=jnp.float32)             # MXU, f32 accumulate
    logits = logits + b_ref[...].astype(jnp.float32)
    out_ref[0] = _masked_mean_nll(_log_softmax_f32(logits), target_ref[...])


# ---------------------------------------------------------------------------
# Wrappers
# ---------------------------------------------------------------------------

def _scalar_loss_call(kernel, arrays, cost):
    """Grid-less single-block pallas_call returning a scalar.

    Deliberately no grid / dimension_semantics / megacore split: the whole
    problem is a few KB, so partitioning would only add ~0.35 us/step overhead.
    """
    out = pl.pallas_call(
        kernel,
        out_shape=jax.ShapeDtypeStruct((1,), jnp.float32),
        in_specs=[pl.BlockSpec(memory_space=pltpu.MemorySpace.VMEM)
                  for _ in arrays],
        out_specs=pl.BlockSpec(memory_space=pltpu.MemorySpace.SMEM),
        cost_estimate=cost,
    )(*arrays)
    return out[0]


def _target_2d(target, batch):
    # Mosaic only supports scalar (not vector) SMEM loads, and a per-row scalar
    # loop would de-vectorize the one-hot gather -> keep target as a tiny (B,1)
    # i32 VMEM block instead.
    return target.astype(jnp.int32).reshape(batch, 1)


def get_loss(pred, target, trans_feat=None):
    """Module-faithful compatibility shim: NLL on precomputed log-probabilities.

    Prefer `get_loss_from_features` (or `get_loss_from_logits`) -- they avoid
    materializing the [B, C] log-prob tensor in HBM and fuse the producer.

    pred:       [B, C] log-probabilities (any float dtype; upcast in-kernel)
    target:     [B]    integer class labels (-100 = ignore, PyTorch default)
    trans_feat: unused, exactly like the reference module
    """
    del trans_feat
    B, C = pred.shape
    cost = pl.CostEstimate(
        flops=3 * B * C,
        transcendentals=0,
        bytes_accessed=B * C * pred.dtype.itemsize + B * 4 + 4,
    )
    return _scalar_loss_call(_nll_loss_kernel, (pred, _target_2d(target, B)), cost)


def get_loss_from_logits(logits, target):
    """Fused log_softmax + nll_loss in one kernel (no log-prob HBM round trip)."""
    B, C = logits.shape
    cost = pl.CostEstimate(
        flops=6 * B * C,
        transcendentals=B * C,
        bytes_accessed=B * C * logits.dtype.itemsize + B * 4 + 4,
    )
    return _scalar_loss_call(_logsoftmax_nll_kernel, (logits, _target_2d(target, B)), cost)


def get_loss_from_features(features, weight, bias, target):
    """PRIMARY path: fused final-FC matmul + log_softmax + nll_loss (one pallas_call).

    features : [B, H]  last-layer activations
    weight   : [H, C]  final linear weight, (in_features, out_features) layout
               (i.e. the transpose of torch.nn.Linear.weight)
    bias     : [C]     final linear bias
    target   : [B]     integer class labels (-100 = ignore)
    """
    B, H = features.shape
    H2, C = weight.shape
    assert H == H2, (features.shape, weight.shape)
    bias2d = bias.reshape(1, C)
    cost = pl.CostEstimate(
        flops=2 * B * H * C + 6 * B * C,
        transcendentals=B * C,
        bytes_accessed=(B * H * features.dtype.itemsize
                        + H * C * weight.dtype.itemsize
                        + C * bias.dtype.itemsize + B * 4 + 4),
    )
    return _scalar_loss_call(
        _fc_logsoftmax_nll_kernel,
        (features, weight, bias2d, _target_2d(target, B)),
        cost,
    )


# ---------------------------------------------------------------------------
# Self-test
# ---------------------------------------------------------------------------

if __name__ == "__main__":
    key = jax.random.PRNGKey(0)
    k_feat, k_w, k_b, k_t = jax.random.split(key, 4)

    B, H, C = 8, 32, 16                       # small classifier-tail shapes
    feats = jax.random.normal(k_feat, (B, H), dtype=jnp.float32)
    weight = jax.random.normal(k_w, (H, C), dtype=jnp.float32) * 0.1
    bias = jax.random.normal(k_b, (C,), dtype=jnp.float32) * 0.1
    target = jax.random.randint(k_t, (B,), 0, C, dtype=jnp.int32)
    trans_feat = jnp.zeros((B, 3, 3), jnp.float32)   # ignored, as in the PyTorch module

    logits = feats @ weight + bias
    pred = jax.nn.log_softmax(logits, axis=-1)       # classifier ends with log_softmax
    ref = -jnp.mean(pred[jnp.arange(B), target])

    # 1) Module-faithful path: f32 log-probs.
    loss = jax.block_until_ready(get_loss(pred, target, trans_feat))
    assert jnp.allclose(loss, ref, atol=1e-6, rtol=1e-6), (loss, ref)

    # 2) Native bf16 pred: cast happens in-kernel (narrow DMA), math in f32.
    pred_bf16 = pred.astype(jnp.bfloat16)
    loss_bf16 = jax.block_until_ready(get_loss(pred_bf16, target, trans_feat))
    ref_bf16 = -jnp.mean(pred_bf16.astype(jnp.float32)[jnp.arange(B), target])
    assert jnp.allclose(loss_bf16, ref_bf16, atol=1e-4, rtol=1e-4), (loss_bf16, ref_bf16)

    # 3) ignore_index=-100 rows excluded from the mean (PyTorch default).
    target_ign = target.at[0].set(-100)
    loss_ign = jax.block_until_ready(get_loss(pred, target_ign, trans_feat))
    valid = target_ign != -100
    ref_ign = -jnp.sum(
        jnp.where(valid, pred[jnp.arange(B), jnp.maximum(target_ign, 0)], 0.0)
    ) / jnp.sum(valid)
    assert jnp.allclose(loss_ign, ref_ign, atol=1e-6, rtol=1e-6), (loss_ign, ref_ign)

    # 4) Fused logits -> loss path matches log_softmax + nll_loss composition.
    loss_logits = jax.block_until_ready(get_loss_from_logits(logits, target))
    assert jnp.allclose(loss_logits, ref, atol=1e-5, rtol=1e-5), (loss_logits, ref)

    # 5) Fully fused FC + log_softmax + NLL (primary path).
    loss_fused = jax.block_until_ready(get_loss_from_features(feats, weight, bias, target))
    assert jnp.allclose(loss_fused, ref, atol=1e-5, rtol=1e-5), (loss_fused, ref)

    print("KERNEL_OK")
</pallas_src>

<mosaic_0001>
module attributes {stable_mosaic.version = 11 : i64} {
  func.func @_nll_loss_kernel(%arg0: memref<8x16xf32, #tpu.memory_space<vmem>>, %arg1: memref<8x1xi32, #tpu.memory_space<vmem>>, %arg2: memref<1xf32, #tpu.memory_space<smem>>) attributes {dimension_semantics = [], scalar_prefetch = 0 : i64, scratch_operands = 0 : i64, tpu.core_type = #tpu.core_type<tc>} {
    %c0 = arith.constant 0 : index
    %c0_0 = arith.constant 0 : index
    %0 = vector.load %arg0[%c0, %c0_0] : memref<8x16xf32, #tpu.memory_space<vmem>>, vector<8x16xf32>
    %c0_1 = arith.constant 0 : index
    %c0_2 = arith.constant 0 : index
    %1 = vector.load %arg1[%c0_1, %c0_2] : memref<8x1xi32, #tpu.memory_space<vmem>>, vector<8x1xi32>
    %2 = tpu.iota {dimensions = array<i32: 1>} : vector<8x16xi32>
    %3 = vector.broadcast %1 : vector<8x1xi32> to vector<8x16xi32>
    %4 = arith.cmpi eq, %2, %3 : vector<8x16xi32>
    %cst = arith.constant 0.000000e+00 : f32
    %5 = vector.broadcast %cst : f32 to vector<8x16xf32>
    %6 = arith.select %4, %0, %5 : vector<8x16xi1>, vector<8x16xf32>
    %cst_3 = arith.constant dense<0.000000e+00> : vector<8xf32>
    %7 = vector.multi_reduction <add>, %6, %cst_3 [1] : vector<8x16xf32> to vector<8xf32>
    %8 = vector.shape_cast %7 : vector<8xf32> to vector<8x1xf32>
    %c-100_i32 = arith.constant -100 : i32
    %9 = vector.broadcast %c-100_i32 : i32 to vector<8x1xi32>
    %10 = arith.cmpi ne, %1, %9 : vector<8x1xi32>
    %11 = arith.extui %10 : vector<8x1xi1> to vector<8x1xi32>
    %12 = arith.sitofp %11 : vector<8x1xi32> to vector<8x1xf32>
    %13 = tpu.concatenate %8, %12 in 1 : vector<8x1xf32>, vector<8x1xf32> -> vector<8x2xf32>
    %cst_4 = arith.constant dense<0.000000e+00> : vector<2xf32>
    %14 = vector.multi_reduction <add>, %13, %cst_4 [0] : vector<8x2xf32> to vector<2xf32>
    %15 = vector.shape_cast %14 : vector<2xf32> to vector<1x2xf32>
    %16 = vector.extract_strided_slice %15 {offsets = [0, 0], sizes = [1, 1], strides = [1, 1]} : vector<1x2xf32> to vector<1x1xf32>
    %17 = vector.shape_cast %16 : vector<1x1xf32> to vector<1x1x1xf32>
    %cst_5 = arith.constant dense<0.000000e+00> : vector<1xf32>
    %18 = vector.multi_reduction <add>, %17, %cst_5 [1, 2] : vector<1x1x1xf32> to vector<1xf32>
    %19 = vector.shape_cast %18 : vector<1xf32> to vector<1x1x1xf32>
    %20 = vector.extract %19[0, 0, 0] : f32 from vector<1x1x1xf32>
    %21 = vector.extract_strided_slice %15 {offsets = [0, 1], sizes = [1, 1], strides = [1, 1]} : vector<1x2xf32> to vector<1x1xf32>
    %22 = vector.shape_cast %21 : vector<1x1xf32> to vector<1x1x1xf32>
    %cst_6 = arith.constant dense<0.000000e+00> : vector<1xf32>
    %23 = vector.multi_reduction <add>, %22, %cst_6 [1, 2] : vector<1x1x1xf32> to vector<1xf32>
    %24 = vector.shape_cast %23 : vector<1xf32> to vector<1x1x1xf32>
    %25 = vector.extract %24[0, 0, 0] : f32 from vector<1x1x1xf32>
    %cst_7 = arith.constant 0.000000e+00 : f32
    %26 = arith.subf %cst_7, %20 : f32
    %27 = arith.divf %26, %25 : f32
    %c0_8 = arith.constant 0 : index
    %28 = memref.load %arg2[%c0_8] : memref<1xf32, #tpu.memory_space<smem>>
    memref.store %27, %arg2[%c0_8] : memref<1xf32, #tpu.memory_space<smem>>
    return
  }
}

</mosaic_0001>

<llo_original>
// kernel: tpu_custom_call.1
$region0: #{tpu_custom_call.1}
  #allocation0 [shape = 'u32[]', space=smem, size = 0x4, offset = 0x4, fixed_abs, tag = 'smem constant byte address 0x4 - core index']
  #allocation1 [shape = 'u32[144,128]{1,0:T(1,128)}', space=vmem, size = 0x12000, scoped, tag = 'internal scratch']
  %s0 = inlined_call_operand.vmem [shape: f32[8,16], index: 0, kind: input, shape index: {}]
  %s1 = inlined_call_operand.vmem [shape: s32[8,1], index: 1, kind: input, shape index: {}]
  %s2 = inlined_call_operand.hbm [shape: f32[1], index: 2, kind: output, shape index: {}]
  %s3 = sld [smem:[#allocation0]]
  $region18: #{tpu_custom_call.1} parent=0
    _
  %s5 = ssub.s32 1, %s3
  %s6 = scalar_select 0, %s5, %s3
  $region1: #{tpu_custom_call.1} parent=0
    #allocation2 [shape = 'u8[512]{0}', space=smem, size = 0x200, scoped, tag = 'output window, operand 0, single buffered']
    #allocation3 [shape = 's32[1]{0}', space=sflag, size = 0x4, scoped, tag = 'scoped memory for tpu_custom_call.1']
    %7 = vsyncpa [#allocation3], 0
    // Predicated region
    $region2: #{tpu_custom_call.1} parent=1 // pred_check
      _
    $region3: #{tpu_custom_call.1} parent=1 // pred_check_branch
      %9 = sbr.rel (0) target = $region5
    $region4: #{tpu_custom_call.1} parent=1 // pred_region
      _
    $region5: #{tpu_custom_call.1} parent=1 // pred_fallthru
      _
    // Predicated region
    $region6: #{tpu_custom_call.1} parent=1 // pred_check
      _
    $region7: #{tpu_custom_call.1} parent=1 // pred_check_branch
      %11 = sbr.rel (0) target = $region9
    $region8: #{tpu_custom_call.1} parent=1 // pred_region
      _
    $region9: #{tpu_custom_call.1} parent=1 // pred_fallthru
      _
    %v12 = vld [vmem:[%s0] sm:$0xff]
    %v13 = vld [vmem:[%s1] sm:$0xff]
    %v14 = vlaneseq
    %v15 = vand.u32 %v14, 127
    %16 = vset.pattern.permute.xlu0 0
    %17 = vperm.xlu0 %16, %v13
    %v18 = vpop.permute.xlu0 %17
    %vm19 = vcmp.eq.s32.totalorder %v15, %v18
    %v20 = vsel %vm19, %v12, 0.0
    %vm21 = vcmask 130048
    %v22 = vsel %vm21, %v20, 0.0
    %23 = vadd.xlane.f32.xlu0 %v22
    %v24 = vpop.xlane.xlu0 %23
    %vm25 = vcmp.ne.s32.totalorder %v13, 4294967196
    %v26 = vsel %vm25, 1, 0
    %v27 = vcvt.s32.f32 %v26
    %29 = vrot.lane.b32.xlu0 %v27, 1
    %v30 = vpop.permute.xlu0 %29
    %vm32 = vcmask 7168
    %v33 = vsel %vm32, %v24, %v30
    %vm34 = vcmask 15360
    %v35 = vsel %vm34, %v33, 0.0
    %v36 = vrot.slane %v35, 4
    %v37 = vadd.f32 %v35, %v36
    %v38 = vrot.slane %v37, 2
    %v39 = vadd.f32 %v37, %v38
    %v40 = vrot.slane %v39, 1
    %v41 = vadd.f32 %v39, %v40
    %v42 = vadd.f32 %v41, 0.0
    %s43 = vtos %v42
    %45 = vrot.lane.b32.xlu0 %v42, 127
    %v46 = vpop.permute.xlu0 %45
    %s48 = vtos %v46
    %s49 = ssub.f32 0.0, %s43
    %v50 = vstv %s48
    %v51 = vrcp.pop %v50
    %s52 = vtos %v51
    %s53 = smul.f32 %s49, %s52
    %s54 = scalar_lea.smem [#allocation2], 0
    %55 = sst [smem:[%s54]] %s53
    // Predicated region
    $region10: #{tpu_custom_call.1} parent=1 // pred_check
      _
    $region11: #{tpu_custom_call.1} parent=1 // pred_check_branch
      %57 = sbr.rel (0) target = $region13
    $region12: #{tpu_custom_call.1} parent=1 // pred_region
      %s59 = ssub.s32 16, 16
      %60 = vsyncadd [#allocation3], %s59
      %63 = dma.smem_to_hbm [#allocation2], 16, %s2, [#allocation3]
    $region13: #{tpu_custom_call.1} parent=1 // pred_fallthru
      _
    // Predicated region
    $region14: #{tpu_custom_call.1} parent=1 // pred_check
      _
    $region15: #{tpu_custom_call.1} parent=1 // pred_check_branch
      %65 = sbr.rel (0) target = $region17
    $region16: #{tpu_custom_call.1} parent=1 // pred_region
      %66 = dma.done [#allocation3], 16
    $region17: #{tpu_custom_call.1} parent=1 // pred_fallthru
      _
    %67 = sfence
    %68 = vsyncpa [#allocation3], 1

</llo_original>
